<compile_context>
chip_gen: v7x
topology: tpu7x:2x2x1
jax: 0.10.0
libtpu: 0.0.40
codegen_flags: <defaults>
</compile_context>

<pallas_src>
import functools

import jax
import jax.numpy as jnp
from jax.experimental import pallas as pl
from jax.experimental.pallas import tpu as pltpu

LANE = 128
SUBLANE = 8


def _round_up(x, m):
    return ((x + m - 1) // m) * m


def _cdiv(a, b):
    return -(-a // b)


# ---------------------------------------------------------------------------
# Kernels
# ---------------------------------------------------------------------------
def _mean_full_kernel(x_ref, o_ref, *, inv_n):
    """Whole reduction axis resident: x_ref (N, TILE_F) -> o_ref (1, TILE_F)."""
    s = jnp.sum(x_ref[...].astype(jnp.float32), axis=0, keepdims=True)
    o_ref[...] = (s * inv_n).astype(o_ref.dtype)


def _mean_chunked_f32_kernel(x_ref, o_ref, *, inv_n, n, nb, mask_tail):
    """N chunked on grid axis 1; accumulate directly into resident f32 output."""
    j = pl.program_id(1)

    @pl.when(j == 0)
    def _():
        o_ref[...] = jnp.zeros_like(o_ref)

    x = x_ref[...]
    if mask_tail:
        # Tail chunk reads rows >= n (garbage) from the boundary block: mask them.
        row = jax.lax.broadcasted_iota(jnp.int32, (nb, 1), 0)
        x = jnp.where(row + j * nb < n, x, 0.0)
    o_ref[...] += jnp.sum(x, axis=0, keepdims=True)

    @pl.when(j == pl.num_programs(1) - 1)
    def _():
        o_ref[...] = o_ref[...] * inv_n


def _mean_chunked_acc_kernel(x_ref, o_ref, acc_ref, *, inv_n, n, nb, mask_tail):
    """N chunked; low-precision input accumulates into an f32 scratch."""
    j = pl.program_id(1)

    @pl.when(j == 0)
    def _():
        acc_ref[...] = jnp.zeros_like(acc_ref)

    x = x_ref[...].astype(jnp.float32)
    if mask_tail:
        row = jax.lax.broadcasted_iota(jnp.int32, (nb, 1), 0)
        x = jnp.where(row + j * nb < n, x, 0.0)
    acc_ref[...] += jnp.sum(x, axis=0, keepdims=True)

    @pl.when(j == pl.num_programs(1) - 1)
    def _():
        o_ref[...] = (acc_ref[...] * inv_n).astype(o_ref.dtype)


# ---------------------------------------------------------------------------
# Wrapper
# ---------------------------------------------------------------------------
def avg_pool(x, *, max_block_bytes=12 * 1024 * 1024):
    """Mean over dim 0 with keepdim=True (torch: inp.mean(dim=0, keepdim=True))."""
    orig_shape = x.shape
    n = int(orig_shape[0])
    f = 1
    for d in orig_shape[1:]:
        f *= int(d)

    itemsize = jnp.dtype(x.dtype).itemsize
    sub = max(SUBLANE, 32 // itemsize)  # sublane packing granularity per dtype
    inv_n = 1.0 / n

    x2 = x.reshape(n, f)

    # Advisory cost: one streaming read of the input plus one tiny write.
    cost = pl.CostEstimate(
        flops=n * f,
        transcendentals=0,
        bytes_accessed=n * f * itemsize + f * itemsize,
    )

    def _params(semantics, block_bytes):
        # 2x double-buffered input block + headroom; capped for v7x's 64 MiB VMEM.
        vmem_limit = int(
            min(40 * 1024 * 1024,
                max(32 * 1024 * 1024, 2 * block_bytes + 8 * 1024 * 1024)))
        return pltpu.CompilerParams(
            dimension_semantics=semantics, vmem_limit_bytes=vmem_limit)

    # "fits" only if keeping the whole N axis resident still leaves >= ~2 KiB
    # contiguous row segments per DMA (tile_f >= 512 f32 / 1024 bf16, or all of F).
    min_tile_f = min(_round_up(f, LANE), max(LANE, _round_up(2048 // itemsize, LANE)))
    fits = n * min_tile_f * itemsize <= max_block_bytes

    if fits:
        tile_cap = (max_block_bytes // (n * itemsize)) // LANE * LANE
        tile_f = max(LANE, min(_round_up(f, LANE), 2048, tile_cap))
        # Guarantee >= 2 feature tiles (v7x megacore + DMA/compute overlap).
        while _cdiv(f, tile_f) < 2 and tile_f > LANE:
            tile_f = max(LANE, _round_up(tile_f // 2, LANE))
        grid_f = _cdiv(f, tile_f)
        block_bytes = n * tile_f * itemsize

        out = pl.pallas_call(
            functools.partial(_mean_full_kernel, inv_n=inv_n),
            out_shape=jax.ShapeDtypeStruct((1, f), x.dtype),
            grid_spec=pltpu.PrefetchScalarGridSpec(
                num_scalar_prefetch=0,
                grid=(grid_f,),
                in_specs=[pl.BlockSpec((n, tile_f), lambda i: (0, i))],
                out_specs=pl.BlockSpec((1, tile_f), lambda i: (0, i)),
            ),
            compiler_params=_params(("parallel",), block_bytes),
            cost_estimate=cost,
        )(x2)
    else:
        # N too large for a single block: chunk it on an inner 'arbitrary' axis.
        tile_f = max(LANE, min(_round_up(f, LANE), 2048))
        while _cdiv(f, tile_f) < 2 and tile_f > LANE:
            tile_f = max(LANE, _round_up(tile_f // 2, LANE))
        grid_f = _cdiv(f, tile_f)

        # Balanced N chunks, sized to the VMEM budget and never much larger than N.
        nb_cap = max(sub, (max_block_bytes // (tile_f * itemsize)) // sub * sub)
        n_chunks = _cdiv(n, nb_cap)
        nb = min(nb_cap, _round_up(_cdiv(n, n_chunks), sub))
        n_chunks = _cdiv(n, nb)
        mask_tail = (n % nb) != 0
        block_bytes = nb * tile_f * itemsize

        grid = (grid_f, n_chunks)
        in_specs = [pl.BlockSpec((nb, tile_f), lambda i, j: (j, i))]
        out_specs = pl.BlockSpec((1, tile_f), lambda i, j: (0, i))
        params = _params(("parallel", "arbitrary"), block_bytes)

        if x.dtype == jnp.float32:
            out = pl.pallas_call(
                functools.partial(_mean_chunked_f32_kernel, inv_n=inv_n,
                                  n=n, nb=nb, mask_tail=mask_tail),
                out_shape=jax.ShapeDtypeStruct((1, f), jnp.float32),
                grid_spec=pltpu.PrefetchScalarGridSpec(
                    num_scalar_prefetch=0,
                    grid=grid,
                    in_specs=in_specs,
                    out_specs=out_specs,
                ),
                compiler_params=params,
                cost_estimate=cost,
            )(x2)
        else:
            out = pl.pallas_call(
                functools.partial(_mean_chunked_acc_kernel, inv_n=inv_n,
                                  n=n, nb=nb, mask_tail=mask_tail),
                out_shape=jax.ShapeDtypeStruct((1, f), x.dtype),
                grid_spec=pltpu.PrefetchScalarGridSpec(
                    num_scalar_prefetch=0,
                    grid=grid,
                    in_specs=in_specs,
                    out_specs=out_specs,
                    scratch_shapes=[pltpu.VMEM((1, tile_f), jnp.float32)],
                ),
                compiler_params=params,
                cost_estimate=cost,
            )(x2)

    return out.reshape((1,) + tuple(orig_shape[1:]))


if __name__ == "__main__":
    key = jax.random.PRNGKey(0)

    # NCHW-style input; dim 0 is the reduction axis. Fits path, two feature tiles.
    x = jax.random.normal(key, (8, 4, 16, 16), dtype=jnp.float32)
    out = jax.block_until_ready(avg_pool(x))
    ref = jnp.mean(x, axis=0, keepdims=True)
    assert out.shape == ref.shape, (out.shape, ref.shape)
    assert jnp.allclose(out, ref, atol=1e-5, rtol=1e-5)

    # Chunked-N f32 path (forced with an artificially tiny VMEM budget), N % nb == 0.
    x2 = jax.random.normal(jax.random.PRNGKey(0), (64, 4, 16, 16), dtype=jnp.float32)
    out2 = jax.block_until_ready(avg_pool(x2, max_block_bytes=16 * 1024))
    ref2 = jnp.mean(x2, axis=0, keepdims=True)
    assert out2.shape == ref2.shape, (out2.shape, ref2.shape)
    assert jnp.allclose(out2, ref2, atol=1e-5, rtol=1e-5)

    # Chunked bf16 path (f32 scratch accumulator).
    x3 = jax.random.normal(jax.random.PRNGKey(0), (64, 4, 16, 16), dtype=jnp.bfloat16)
    out3 = jax.block_until_ready(avg_pool(x3, max_block_bytes=8 * 1024))
    ref3 = jnp.mean(x3.astype(jnp.float32), axis=0, keepdims=True)
    assert jnp.allclose(out3.astype(jnp.float32), ref3, atol=2e-2, rtol=2e-2)

    # Non-128-aligned feature dim (boundary F block, no wrapper padding).
    x4 = jax.random.normal(jax.random.PRNGKey(0), (13, 3, 10, 10), dtype=jnp.float32)
    out4 = jax.block_until_ready(avg_pool(x4))
    ref4 = jnp.mean(x4, axis=0, keepdims=True)
    assert out4.shape == ref4.shape, (out4.shape, ref4.shape)
    assert jnp.allclose(out4, ref4, atol=1e-5, rtol=1e-5)

    # Chunked path with a ragged N tail (in-kernel iota mask, no row padding).
    x5 = jax.random.normal(jax.random.PRNGKey(0), (70, 4, 16, 16), dtype=jnp.float32)
    out5 = jax.block_until_ready(avg_pool(x5, max_block_bytes=16 * 1024))
    ref5 = jnp.mean(x5, axis=0, keepdims=True)
    assert out5.shape == ref5.shape, (out5.shape, ref5.shape)
    assert jnp.allclose(out5, ref5, atol=1e-5, rtol=1e-5)

    print("KERNEL_OK")
</pallas_src>

<mosaic_0001>
module attributes {stable_mosaic.version = 11 : i64} {
  func.func @_mean_full_kernel(%arg0: i32, %arg1: memref<8x512xf32, #tpu.memory_space<vmem>>, %arg2: memref<1x512xf32, #tpu.memory_space<vmem>>) attributes {dimension_semantics = [#tpu.dimension_semantics<parallel>], iteration_bounds = array<i64: 2>, scalar_prefetch = 0 : i64, scratch_operands = 0 : i64, tpu.core_type = #tpu.core_type<tc>, window_params = [{transform_indices = @transform_0, window_bounds = array<i64: 8, 512>}, {transform_indices = @transform_1, window_bounds = array<i64: 1, 512>}]} {
    %c0 = arith.constant 0 : index
    %c0_0 = arith.constant 0 : index
    %0 = vector.load %arg1[%c0, %c0_0] : memref<8x512xf32, #tpu.memory_space<vmem>>, vector<8x512xf32>
    %cst = arith.constant dense<0.000000e+00> : vector<512xf32>
    %1 = vector.multi_reduction <add>, %0, %cst [0] : vector<8x512xf32> to vector<512xf32>
    %2 = vector.shape_cast %1 : vector<512xf32> to vector<1x512xf32>
    %cst_1 = arith.constant 1.250000e-01 : f32
    %3 = vector.broadcast %cst_1 : f32 to vector<1x512xf32>
    %4 = arith.mulf %2, %3 : vector<1x512xf32>
    %c0_2 = arith.constant 0 : index
    %c0_3 = arith.constant 0 : index
    %5 = vector.load %arg2[%c0_2, %c0_3] : memref<1x512xf32, #tpu.memory_space<vmem>>, vector<1x512xf32>
    tpu.vector_store %arg2[%c0_2, %c0_3], %4 {strides = array<i32>} : memref<1x512xf32, #tpu.memory_space<vmem>>, vector<1x512xf32>,
    return
  }
  func.func @transform_0(%arg0: i32) -> (i32, i32) {
    %c0_i32 = arith.constant 0 : i32
    %c0_i32_0 = arith.constant 0 : i32
    return %c0_i32, %arg0 : i32, i32
  }
  func.func @transform_1(%arg0: i32) -> (i32, i32) {
    %c0_i32 = arith.constant 0 : i32
    %c0_i32_0 = arith.constant 0 : i32
    return %c0_i32, %arg0 : i32, i32
  }
}

</mosaic_0001>

<llo_original>
// kernel: tpu_custom_call.1
$region0: #{tpu_custom_call.1}
  #allocation0 [shape = 'u32[]', space=smem, size = 0x4, offset = 0x4, fixed_abs, tag = 'smem constant byte address 0x4 - core index']
  #allocation1 [shape = 'u32[144,128]{1,0:T(1,128)}', space=vmem, size = 0x12000, scoped, tag = 'internal scratch']
  %s0 = inlined_call_operand.hbm [shape: f32[8,1024], index: 0, kind: input, shape index: {}]
  %s1 = inlined_call_operand.hbm [shape: f32[1,1024], index: 1, kind: output, shape index: {}]
  %s2 = sld [smem:[#allocation0]]
  $region41: #{tpu_custom_call.1} parent=0
    _
  %s4 = ssub.s32 1, %s2
  %s5 = scalar_select 0, %s4, %s2
  $region1: #{tpu_custom_call.1} parent=0
    #allocation2 [shape = 'u8[32768]{0}', space=vmem, size = 0x8000, scoped, tag = 'input window, operand 0']
    #allocation3 [shape = 's32[2]{0}', space=sflag, size = 0x8, scoped, tag = 'scoped memory for tpu_custom_call.1']
    #allocation4 [shape = 's32[2]{0}', space=sflag, size = 0x8, scoped, tag = 'scoped memory for tpu_custom_call.1']
    #allocation5 [shape = 'u8[4096]{0}', space=vmem, size = 0x1000, scoped, tag = 'output window, operand 0']
    %6 = vsyncpa [#allocation3], 0
    %s7 = scalar_lea.sflag [#allocation3], 1
    %8 = vsyncpa %s7, 0
    %9 = vsyncpa [#allocation4], 0
    %s10 = scalar_lea.sflag [#allocation4], 1
    %11 = vsyncpa %s10, 0
    loop: start=0, step=1, limit=4
    $region2: #{tpu_custom_call.1} parent=1 // loop_pre_header
      _
    $region3: #{tpu_custom_call.1} parent=1 // loop_header
      %s13 = sphi 0, %s17
      %p14 = scmp.ge.s32.totalorder %s13, 4
      %s23 = sphi 0, %s25
      %s26 = sphi 0, %s23
      %s27 = sphi 0, %s26
      %s43 = sphi 0, %s27
      %s49 = sphi 0, %s51
      %s52 = sphi 0, %s49
      %s53 = sphi 0, %s52
      %s69 = sphi 0, %s53
    $region4: #{tpu_custom_call.1} parent=1 // loop_header_branch
      %16 = sbr.rel (%p14) target = $region8
    $region5: #{tpu_custom_call.1} parent=1 // loop_body
      %s18 = ssub.s32 %s13, 1
      %s19 = ssub.s32 %s13, 2
      %s20 = sadd.s32 %s13, 1
      %s21 = ssub.s32 %s13, %s20
      %p22 = scmp.eq.s32.totalorder %s21, 0
      %s24 = sadd.s32 %s23, 1
      %s25 = scalar_select %p22, %s23, %s24
      %p28 = pneg %p22
      %p29 = scmp.eq.s32.totalorder %s13, 1
      %p30 = por %p28, %p29
      %p31 = scmp.ne.s32.totalorder %s23, %s26
      %p32 = scmp.eq.s32.totalorder %s13, 0
      %p33 = por %p31, %p32
      %p34 = scmp.ne.s32.totalorder %s23, %s26
      %p35 = scmp.eq.s32.totalorder %s18, 1
      %p36 = por %p34, %p35
      %p37 = scmp.ne.s32.totalorder %s26, %s27
      %p38 = scmp.eq.s32.totalorder %s18, 0
      %p39 = por %p37, %p38
      %p40 = scmp.ne.s32.totalorder %s26, %s27
      %p41 = scmp.eq.s32.totalorder %s19, 1
      %p42 = por %p40, %p41
      %p44 = scmp.ne.s32.totalorder %s27, %s43
      %p45 = scmp.eq.s32.totalorder %s19, 0
      %p46 = por %p44, %p45
      %s47 = ssub.s32 %s13, %s20
      %p48 = scmp.eq.s32.totalorder %s47, 0
      %s50 = sadd.s32 %s49, 1
      %s51 = scalar_select %p48, %s49, %s50
      %p54 = pneg %p48
      %p55 = scmp.eq.s32.totalorder %s13, 1
      %p56 = por %p54, %p55
      %p57 = scmp.ne.s32.totalorder %s49, %s52
      %p58 = scmp.eq.s32.totalorder %s13, 0
      %p59 = por %p57, %p58
      %p60 = scmp.ne.s32.totalorder %s49, %s52
      %p61 = scmp.eq.s32.totalorder %s18, 1
      %p62 = por %p60, %p61
      %p63 = scmp.ne.s32.totalorder %s52, %s53
      %p64 = scmp.eq.s32.totalorder %s18, 0
      %p65 = por %p63, %p64
      %p66 = scmp.ne.s32.totalorder %s52, %s53
      %p67 = scmp.eq.s32.totalorder %s19, 1
      %p68 = por %p66, %p67
      %p70 = scmp.ne.s32.totalorder %s53, %s69
      %p71 = scmp.eq.s32.totalorder %s19, 0
      %p72 = por %p70, %p71
      %p73 = scmp.le.s32.totalorder 1, %s13
      %p74 = scmp.lt.s32.totalorder %s13, 3
      %p75 = pnand %p73, %p74
      %p76 = pneg %p75
      // Predicated region
      $region9: #{tpu_custom_call.1} parent=5 // pred_check
        _
      $region10: #{tpu_custom_call.1} parent=5 // pred_check_branch
        %78 = sbr.rel (%p75) target = $region12
      $region11: #{tpu_custom_call.1} parent=5 // pred_region
        %s79 = ssub.s32 %s13, 1
      $region12: #{tpu_custom_call.1} parent=5 // pred_fallthru
        _
      %p80 = scmp.lt.s32.totalorder %s13, 2
      // Predicated region
      $region13: #{tpu_custom_call.1} parent=5 // pred_check
        %p81 = pneg %p80
      $region14: #{tpu_custom_call.1} parent=5 // pred_check_branch
        %83 = sbr.rel (%p81) target = $region16
      $region15: #{tpu_custom_call.1} parent=5 // pred_region
        // Predicated region
        $region17: #{tpu_custom_call.1} parent=15 // pred_check
          %p84 = pneg %p33
        $region18: #{tpu_custom_call.1} parent=15 // pred_check_branch
          %86 = sbr.rel (%p84) target = $region20
        $region19: #{tpu_custom_call.1} parent=15 // pred_region
          %s87 = sand.u32 %s23, 1
          %s88 = scalar_lea.sflag [#allocation3], %s87
          %s89 = sand.u32 %s23, 1
          %s90 = smul.addr %s89, 32
          %s91 = scalar_lea.vmem [#allocation2], %s90
          %s92 = smul.u32 4, %s13
          %s94 = ssub.s32 512, 512
          %95 = vsyncadd %s88, %s94
          %s96 = smul.addr %s92, 128
          %s97 = scalar_lea.hbm %s0, %s96
          %s99 = sshll.u32 %s91, 4
          %s100 = int_to_ptr.vmem [resolvable:$true] %s99
          %102 = dma.hbm_to_vmem [thread:$0]  %s97, 512, %s100, %s88
        $region20: #{tpu_custom_call.1} parent=15 // pred_fallthru
          _
      $region16: #{tpu_custom_call.1} parent=5 // pred_fallthru
        _
      %p103 = scmp.le.s32.totalorder 1, %s13
      %p104 = scmp.lt.s32.totalorder %s13, 3
      %p105 = pnand %p103, %p104
      %p106 = pneg %p105
      // Predicated region
      $region21: #{tpu_custom_call.1} parent=5 // pred_check
        _
      $region22: #{tpu_custom_call.1} parent=5 // pred_check_branch
        %108 = sbr.rel (%p105) target = $region24
      $region23: #{tpu_custom_call.1} parent=5 // pred_region
        %s109 = ssub.s32 %s13, 1
        %s110 = sand.u32 %s26, 1
        %s111 = scalar_lea.sflag [#allocation3], %s110
        %s112 = sand.u32 %s26, 1
        %s113 = smul.addr %s112, 32
        %s114 = scalar_lea.vmem [#allocation2], %s113
        // Predicated region
        $region25: #{tpu_custom_call.1} parent=23 // pred_check
          %p115 = pneg %p39
        $region26: #{tpu_custom_call.1} parent=23 // pred_check_branch
          %117 = sbr.rel (%p115) target = $region28
        $region27: #{tpu_custom_call.1} parent=23 // pred_region
          %118 = dma.done %s111, 512
        $region28: #{tpu_custom_call.1} parent=23 // pred_fallthru
          _
        %s119 = sand.u32 %s26, 1
        %s120 = scalar_lea.sflag [#allocation3], %s119
        %s121 = sand.u32 %s26, 1
        %s122 = smul.addr %s121, 32
        %s123 = scalar_lea.vmem [#allocation2], %s122
        %p124 = pneg %p39
        %p125 = pneg %p36
        %p126 = pneg %p65
        %p127 = pneg %p62
        %s128 = sand.u32 %s52, 1
        %s129 = scalar_lea.sflag [#allocation4], %s128
        %s130 = sand.u32 %s52, 1
        %s131 = smul.addr %s130, 4
        %s132 = scalar_lea.vmem [#allocation5], %s131
        %s133 = smul.u32 4, %s18
        %s134 = smul.u32 4, %s18
        %v135 = vld [vmem:[%s114] sm:$0xff]
        %v136 = vld [vmem:[%s114 + $0x8] sm:$0xff]
        %v137 = vld [vmem:[%s114 + $0x10] sm:$0xff]
        %v138 = vld [vmem:[%s114 + $0x18] sm:$0xff]
        %v139 = vrot.slane %v135, 4
        %v140 = vadd.f32 %v135, %v139
        %v141 = vrot.slane %v140, 2
        %v142 = vadd.f32 %v140, %v141
        %v143 = vrot.slane %v142, 1
        %v144 = vadd.f32 %v142, %v143
        %v145 = vrot.slane %v136, 4
        %v146 = vadd.f32 %v136, %v145
        %v147 = vrot.slane %v146, 2
        %v148 = vadd.f32 %v146, %v147
        %v149 = vrot.slane %v148, 1
        %v150 = vadd.f32 %v148, %v149
        %v151 = vrot.slane %v137, 4
        %v152 = vadd.f32 %v137, %v151
        %v153 = vrot.slane %v152, 2
        %v154 = vadd.f32 %v152, %v153
        %v155 = vrot.slane %v154, 1
        %v156 = vadd.f32 %v154, %v155
        %v157 = vrot.slane %v138, 4
        %v158 = vadd.f32 %v138, %v157
        %v159 = vrot.slane %v158, 2
        %v160 = vadd.f32 %v158, %v159
        %v161 = vrot.slane %v160, 1
        %v162 = vadd.f32 %v160, %v161
        %v163 = vmul.f32 %v144, 0.125
        %v164 = vmul.f32 %v150, 0.125
        %v165 = vmul.f32 %v156, 0.125
        %v166 = vmul.f32 %v162, 0.125
        %v171 = vcombine.low %v163, %v164
        %v172 = vcombine.low %v165, %v166
        %v174 = vunpack.c.l.s4 1966171168
        %v175 = vunpack.c.0.s8 %v174
        %v176 = vlaneseq
        %v177 = vshrl.u32 %v176, 7
        %v178 = vsub.s32 %v175, %v177
        %v179 = vrot.slane %v171, %v178
        %v181 = vunpack.c.l.s4 1966171168
        %v182 = vunpack.c.0.s8 %v181
        %v183 = vlaneseq
        %v184 = vshrl.u32 %v183, 7
        %v185 = vsub.s32 %v182, %v184
        %v186 = vrot.slane %v172, %v185
        %v187 = vcombine.low %v179, %v186
        %v189 = vunpack.c.l.s4 1966171168
        %v190 = vunpack.c.0.s8 %v189
        %v191 = vlaneseq
        %v192 = vshrl.u32 %v191, 7
        %v193 = vsub.s32 %v190, %v192
        %v194 = vrot.slane %v187, %v193
        %v196 = vlaneseq
        %vm197 = vcmp.ge.s32.totalorder %v196, 0
        %vm198 = vcmp.lt.s32.totalorder %v196, 512
        %vm199 = vmand %vm197, %vm198
        %200 = vst.msk [vmem:[%s132] sm:$0xf] %vm199, %v194
        %s201 = sand.u32 %s52, 1
        %s202 = scalar_lea.sflag [#allocation4], %s201
        %s203 = sand.u32 %s52, 1
        %s204 = smul.addr %s203, 4
        %s205 = scalar_lea.vmem [#allocation5], %s204
        // Predicated region
        $region29: #{tpu_custom_call.1} parent=23 // pred_check
          %p206 = pneg %p62
        $region30: #{tpu_custom_call.1} parent=23 // pred_check_branch
          %208 = sbr.rel (%p206) target = $region32
        $region31: #{tpu_custom_call.1} parent=23 // pred_region
          %s209 = smul.u32 4, %s18
          %s211 = ssub.s32 64, 64
          %212 = vsyncadd %s202, %s211
          %s213 = smul.addr %s209, 16
          %s214 = scalar_lea.hbm %s1, %s213
          %s216 = sshll.u32 %s205, 4
          %s217 = int_to_ptr.vmem [resolvable:$true] %s216
          %219 = dma.vmem_to_hbm [thread:$0]  %s217, 64, %s214, %s202
        $region32: #{tpu_custom_call.1} parent=23 // pred_fallthru
          _
      $region24: #{tpu_custom_call.1} parent=5 // pred_fallthru
        _
      %p220 = scmp.le.s32.totalorder 2, %s13
      // Predicated region
      $region33: #{tpu_custom_call.1} parent=5 // pred_check
        %p221 = pneg %p220
      $region34: #{tpu_custom_call.1} parent=5 // pred_check_branch
        %223 = sbr.rel (%p221) target = $region36
      $region35: #{tpu_custom_call.1} parent=5 // pred_region
        %s224 = ssub.s32 %s13, 2
        // Predicated region
        $region37: #{tpu_custom_call.1} parent=35 // pred_check
          %p225 = pneg %p68
        $region38: #{tpu_custom_call.1} parent=35 // pred_check_branch
          %227 = sbr.rel (%p225) target = $region40
        $region39: #{tpu_custom_call.1} parent=35 // pred_region
          %s228 = sand.u32 %s53, 1
          %s229 = scalar_lea.sflag [#allocation4], %s228
          %s230 = sand.u32 %s53, 1
          %s231 = smul.addr %s230, 4
          %s232 = scalar_lea.vmem [#allocation5], %s231
          %233 = dma.done %s229, 64
        $region40: #{tpu_custom_call.1} parent=35 // pred_fallthru
          _
      $region36: #{tpu_custom_call.1} parent=5 // pred_fallthru
        _
    $region6: #{tpu_custom_call.1} parent=1 // loop_footer
      %s17 = sadd.s32 1, %s13
    $region7: #{tpu_custom_call.1} parent=1 // loop_footer_branch
      %12 = sbr.rel target = $region3
    $region8: #{tpu_custom_call.1} parent=1 // loop_exit
      _
    %234 = vsyncpa [#allocation3], 1
    %s235 = scalar_lea.sflag [#allocation3], 1
    %236 = vsyncpa %s235, 1
    %237 = vsyncpa [#allocation4], 1
    %s238 = scalar_lea.sflag [#allocation4], 1
    %239 = vsyncpa %s238, 1

</llo_original>
